<compile_context>
chip_gen: v7x
topology: tpu7x:2x2x1
jax: 0.10.0
libtpu: 0.0.40
codegen_flags: <defaults>
</compile_context>

<pallas_src>
import jax
import jax.numpy as jnp
from jax.experimental import pallas as pl
from jax.experimental.pallas import tpu as pltpu


def _round_up(x, m):
    return ((x + m - 1) // m) * m


def gated_attn_kernel(x_ref, wab_ref, bab_ref, wc_ref, bc_ref, a_out_ref):
    """One N-tile of the fused gated-attention forward.

    x_ref     : [TN, L]          streamed instance tile (f32 or bf16)
    wab_ref   : [L, 2*d_pad]     fused [wa | wb] (zero padded), VMEM-resident
    bab_ref   : [1, 2*d_pad]     fused [ba | bb] (f32)
    wc_ref    : [d_pad, c_pad]   zero-padded attention_c weight
    bc_ref    : [1, c_pad]       zero-padded attention_c bias (f32)
    a_out_ref : [TN, C]          un-padded f32 output tile (C == n_classes)
    """
    d_pad = wab_ref.shape[-1] // 2
    n_classes = a_out_ref.shape[-1]

    # Cast in-kernel (hidden under the x DMA) instead of a separate HBM pass.
    x = x_ref[...].astype(wab_ref.dtype)

    # Single fused MXU pass over x for both gate projections (f32 accumulate).
    ab = jnp.dot(x, wab_ref[...], preferred_element_type=jnp.float32) + bab_ref[...]

    a = jnp.tanh(ab[:, :d_pad])                      # attention_a: Linear + Tanh
    # attention_b: Linear + Sigmoid, via tanh (1 EUP op instead of exp + divide).
    b = 0.5 * (jnp.tanh(0.5 * ab[:, d_pad:]) + 1.0)
    # Padded gate columns: tanh(0)=0 in the a-half -> gated==0 there (and wc rows
    # D..d_pad are zero), so padding never leaks into real outputs.
    gated = (a * b).astype(wc_ref.dtype)

    # attention_c on the padded width (one MXU pass); store only the real classes.
    A = jnp.dot(gated, wc_ref[...], preferred_element_type=jnp.float32) + bc_ref[...]
    a_out_ref[...] = A[:, :n_classes].astype(a_out_ref.dtype)


def fuse_params(wa, ba, wb, bb, wc, bc, *, mxu_dtype=jnp.bfloat16):
    """One-time weight prep (module init): fuse + zero-pad into MXU-friendly constants.

    mxu_dtype: MXU operand dtype for both matmuls. bf16 is recommended on all
    of v5e/v6e/v7x (f32 accumulation is kept); pass jnp.float32 for exact math.
    """
    L, D = wa.shape
    C = wc.shape[1]
    d_pad = _round_up(max(D, 1), 128)
    c_pad = _round_up(max(C, 1), 128)
    f32 = jnp.float32

    w_ab = jnp.zeros((L, 2 * d_pad), f32)
    w_ab = w_ab.at[:, :D].set(wa.astype(f32))
    w_ab = w_ab.at[:, d_pad:d_pad + D].set(wb.astype(f32))
    b_ab = jnp.zeros((1, 2 * d_pad), f32)
    b_ab = b_ab.at[:, :D].set(ba.astype(f32).reshape(1, D))
    b_ab = b_ab.at[:, d_pad:d_pad + D].set(bb.astype(f32).reshape(1, D))
    wc_p = jnp.zeros((d_pad, c_pad), f32).at[:D, :C].set(wc.astype(f32))
    bc_p = jnp.zeros((1, c_pad), f32).at[:, :C].set(bc.astype(f32).reshape(1, C))

    return dict(
        w_ab=w_ab.astype(mxu_dtype),   # [L, 2*d_pad]
        b_ab=b_ab,                     # [1, 2*d_pad] f32
        wc=wc_p.astype(mxu_dtype),     # [d_pad, c_pad]
        bc=bc_p,                       # [1, c_pad]   f32
        n_classes=C,
    )


def _vmem_capacity_bytes():
    try:
        return int(pltpu.get_tpu_info().vmem_capacity_bytes)
    except Exception:
        return 64 << 20  # conservative per-TC fallback (v7x)


def attn_net_gated(x, params, *, tile_n=2048):
    """Pallas forward of Attn_Net_Gated: returns (A, x) like the PyTorch module.

    x      : [N, L] instances (f32 or bf16; bf16 halves the dominant HBM read).
    params : output of fuse_params (pre-fused, pre-padded weights).
    tile_n : max rows per grid step; automatically clamped to the chip's VMEM.
    """
    N, L = x.shape
    w_ab, b_ab, wc_p, bc_p = params["w_ab"], params["b_ab"], params["wc"], params["bc"]
    C = params["n_classes"]
    d2 = w_ab.shape[1]
    d_pad = d2 // 2
    c_pad = wc_p.shape[1]
    assert w_ab.shape[0] == L, "feature dim mismatch between x and fused weights"

    x_item = jnp.dtype(x.dtype).itemsize
    w_item = jnp.dtype(w_ab.dtype).itemsize
    # bf16 operands want (16,128) tiles; f32 wants (8,128).
    sublane = 16 if min(x_item, w_item) <= 2 else 8

    vmem_cap = _vmem_capacity_bytes()      # 64 MiB/TC on v7x, 128 MiB on v5e/v6e
    budget = int(vmem_cap * 0.8)

    resident_w = (L * d2 + d_pad * c_pad) * w_item + (d2 + c_pad) * 4  # single-buffered

    def vmem_needed(tn):
        stream = 2 * tn * L * x_item + 2 * tn * C * 4      # double-buffered x + out tiles
        temps = tn * (2 * d2 + d_pad + c_pad) * 4          # ab / gate / A temporaries (f32)
        return resident_w + stream + temps

    # Largest tile (multiple of sublane) that covers N and fits the VMEM budget.
    tn = min(_round_up(tile_n, sublane), _round_up(N, sublane))
    while tn > sublane and vmem_needed(tn) > budget:
        tn = _round_up(tn // 2, sublane)

    grid = (pl.cdiv(N, tn),)  # ragged edge handled by Pallas masking (no x pad pass)
    vmem_limit = min(int(vmem_needed(tn) * 1.5) + (4 << 20), vmem_cap)

    def build_call(single_buffer_weights):
        w_mode = ({"pipeline_mode": pl.Buffered(1)} if single_buffer_weights else {})
        return pl.pallas_call(
            gated_attn_kernel,
            grid=grid,
            in_specs=[
                pl.BlockSpec((tn, L), lambda i: (i, 0)),                   # x: streamed
                pl.BlockSpec((L, d2), lambda i: (0, 0), **w_mode),         # fused W (resident)
                pl.BlockSpec((1, d2), lambda i: (0, 0), **w_mode),         # fused bias
                pl.BlockSpec((d_pad, c_pad), lambda i: (0, 0), **w_mode),  # wc (resident)
                pl.BlockSpec((1, c_pad), lambda i: (0, 0), **w_mode),      # bc
            ],
            out_specs=pl.BlockSpec((tn, C), lambda i: (i, 0)),             # un-padded writeback
            out_shape=jax.ShapeDtypeStruct((N, C), jnp.float32),
            compiler_params=pltpu.CompilerParams(
                dimension_semantics=("parallel",),
                vmem_limit_bytes=vmem_limit,
            ),
        )

    try:
        A = build_call(True)(x, w_ab, b_ab, wc_p, bc_p)
    except Exception:
        # Fallback if this JAX build rejects single-buffered (Buffered(1)) specs.
        A = build_call(False)(x, w_ab, b_ab, wc_p, bc_p)

    # The module returns the input unchanged as the second element.
    return A, x


def init_params(key, L, D, n_classes):
    """Deterministic synthetic parameters (shapes match nn.Linear weights^T)."""
    k = jax.random.split(key, 6)
    sa = 1.0 / jnp.sqrt(L)
    sc = 1.0 / jnp.sqrt(D)
    wa = jax.random.uniform(k[0], (L, D), jnp.float32, -sa, sa)
    ba = jax.random.uniform(k[1], (1, D), jnp.float32, -sa, sa)
    wb = jax.random.uniform(k[2], (L, D), jnp.float32, -sa, sa)
    bb = jax.random.uniform(k[3], (1, D), jnp.float32, -sa, sa)
    wc = jax.random.uniform(k[4], (D, n_classes), jnp.float32, -sc, sc)
    bc = jax.random.uniform(k[5], (1, n_classes), jnp.float32, -sc, sc)
    return wa, ba, wb, bb, wc, bc


def _reference(x, wa, ba, wb, bb, wc, bc):
    a = jnp.tanh(x @ wa + ba)
    b = jax.nn.sigmoid(x @ wb + bb)
    return (a * b) @ wc + bc


if __name__ == "__main__":
    # Small shapes consistent with the module: N instances with L features.
    N, L, D, n_classes = 8, 32, 16, 1

    key = jax.random.PRNGKey(0)
    kx, kp = jax.random.split(key)
    x = jax.random.normal(kx, (N, L), jnp.float32)
    wa, ba, wb, bb, wc, bc = init_params(kp, L, D, n_classes)
    A_ref = _reference(x, wa, ba, wb, bb, wc, bc)

    # One-time weight prep (module-init time, not per forward call).
    params_f32 = fuse_params(wa, ba, wb, bb, wc, bc, mxu_dtype=jnp.float32)
    params_bf16 = fuse_params(wa, ba, wb, bb, wc, bc)  # default: bf16 MXU operands

    # f32 MXU path: near-exact check against the pure-JAX reference.
    A, x_out = attn_net_gated(x, params_f32)
    jax.block_until_ready((A, x_out))
    assert A.shape == (N, n_classes)
    assert x_out.shape == (N, L)
    assert jnp.allclose(A, A_ref, atol=2e-5), "f32 mismatch vs reference"
    assert jnp.array_equal(x_out, x)

    # Ragged N (not a multiple of the tile): Pallas masks the edge block; no x pad pass.
    N2 = 13
    x2 = jax.random.normal(jax.random.PRNGKey(1), (N2, L), jnp.float32)
    A2, _ = attn_net_gated(x2, params_f32, tile_n=8)
    jax.block_until_ready(A2)
    assert A2.shape == (N2, n_classes)
    assert jnp.allclose(A2, _reference(x2, wa, ba, wb, bb, wc, bc), atol=2e-5), \
        "ragged-N mismatch vs reference"

    # Default bf16-operand path (recommended on v5e/v6e/v7x); f32 accumulation.
    A_bf16, _ = attn_net_gated(x, params_bf16)
    jax.block_until_ready(A_bf16)
    assert jnp.allclose(A_bf16, A_ref, atol=5e-2, rtol=5e-2), "bf16 mismatch vs reference"

    # TODO(synk): the module's optional Dropout(0.25) branch (dropout=True) is not
    # implemented; the default constructor (dropout=False) needs none.
    print("KERNEL_OK")
</pallas_src>

<mosaic_0001>
module attributes {stable_mosaic.version = 11 : i64} {
  func.func @gated_attn_kernel(%arg0: i32, %arg1: memref<8x32xf32, #tpu.memory_space<vmem>>, %arg2: memref<32x256xf32, #tpu.memory_space<vmem>>, %arg3: memref<1x256xf32, #tpu.memory_space<vmem>>, %arg4: memref<128x128xf32, #tpu.memory_space<vmem>>, %arg5: memref<1x128xf32, #tpu.memory_space<vmem>>, %arg6: memref<8x1xf32, #tpu.memory_space<vmem>>) attributes {dimension_semantics = [#tpu.dimension_semantics<parallel>], iteration_bounds = array<i64: 1>, scalar_prefetch = 0 : i64, scratch_operands = 0 : i64, tpu.core_type = #tpu.core_type<tc>, window_params = [{transform_indices = @transform_0, window_bounds = array<i64: 8, 32>}, {pipeline_mode = #tpu.pipeline_mode<synchronous>, transform_indices = @transform_1, window_bounds = array<i64: 32, 256>}, {pipeline_mode = #tpu.pipeline_mode<synchronous>, transform_indices = @transform_2, window_bounds = array<i64: 1, 256>}, {pipeline_mode = #tpu.pipeline_mode<synchronous>, transform_indices = @transform_3, window_bounds = array<i64: 128, 128>}, {pipeline_mode = #tpu.pipeline_mode<synchronous>, transform_indices = @transform_4, window_bounds = array<i64: 1, 128>}, {transform_indices = @transform_5, window_bounds = array<i64: 8, 1>}]} {
    %c0 = arith.constant 0 : index
    %c0_0 = arith.constant 0 : index
    %0 = vector.load %arg1[%c0, %c0_0] : memref<8x32xf32, #tpu.memory_space<vmem>>, vector<8x32xf32>
    %c0_1 = arith.constant 0 : index
    %c0_2 = arith.constant 0 : index
    %1 = vector.load %arg2[%c0_1, %c0_2] : memref<32x256xf32, #tpu.memory_space<vmem>>, vector<32x256xf32>
    %cst = arith.constant dense<0.000000e+00> : vector<8x256xf32>
    %2 = tpu.matmul %0, %1, %cst {dimension_numbers = #tpu.dot_dimension_numbers<[1], [0], [0], [1], [0, 0, 1, 1], [], []>} : vector<8x32xf32>, vector<32x256xf32>, vector<8x256xf32> -> vector<8x256xf32>
    %c0_3 = arith.constant 0 : index
    %c0_4 = arith.constant 0 : index
    %3 = vector.load %arg3[%c0_3, %c0_4] : memref<1x256xf32, #tpu.memory_space<vmem>>, vector<1x256xf32>
    %4 = vector.broadcast %3 : vector<1x256xf32> to vector<8x256xf32>
    %5 = arith.addf %2, %4 : vector<8x256xf32>
    %6 = vector.extract_strided_slice %5 {offsets = [0, 0], sizes = [8, 128], strides = [1, 1]} : vector<8x256xf32> to vector<8x128xf32>
    %7 = math.tanh %6 : vector<8x128xf32>
    %8 = vector.extract_strided_slice %5 {offsets = [0, 128], sizes = [8, 128], strides = [1, 1]} : vector<8x256xf32> to vector<8x128xf32>
    %cst_5 = arith.constant 5.000000e-01 : f32
    %9 = vector.broadcast %cst_5 : f32 to vector<8x128xf32>
    %10 = arith.mulf %9, %8 : vector<8x128xf32>
    %11 = math.tanh %10 : vector<8x128xf32>
    %cst_6 = arith.constant 1.000000e+00 : f32
    %12 = vector.broadcast %cst_6 : f32 to vector<8x128xf32>
    %13 = arith.addf %11, %12 : vector<8x128xf32>
    %cst_7 = arith.constant 5.000000e-01 : f32
    %14 = vector.broadcast %cst_7 : f32 to vector<8x128xf32>
    %15 = arith.mulf %14, %13 : vector<8x128xf32>
    %16 = arith.mulf %7, %15 : vector<8x128xf32>
    %c0_8 = arith.constant 0 : index
    %c0_9 = arith.constant 0 : index
    %17 = vector.load %arg4[%c0_8, %c0_9] : memref<128x128xf32, #tpu.memory_space<vmem>>, vector<128x128xf32>
    %cst_10 = arith.constant dense<0.000000e+00> : vector<8x128xf32>
    %18 = tpu.matmul %16, %17, %cst_10 {dimension_numbers = #tpu.dot_dimension_numbers<[1], [0], [0], [1], [0, 0, 1, 1], [], []>} : vector<8x128xf32>, vector<128x128xf32>, vector<8x128xf32> -> vector<8x128xf32>
    %c0_11 = arith.constant 0 : index
    %c0_12 = arith.constant 0 : index
    %19 = vector.load %arg5[%c0_11, %c0_12] : memref<1x128xf32, #tpu.memory_space<vmem>>, vector<1x128xf32>
    %20 = vector.broadcast %19 : vector<1x128xf32> to vector<8x128xf32>
    %21 = arith.addf %18, %20 : vector<8x128xf32>
    %22 = vector.extract_strided_slice %21 {offsets = [0, 0], sizes = [8, 1], strides = [1, 1]} : vector<8x128xf32> to vector<8x1xf32>
    %c0_13 = arith.constant 0 : index
    %c0_14 = arith.constant 0 : index
    %23 = vector.load %arg6[%c0_13, %c0_14] : memref<8x1xf32, #tpu.memory_space<vmem>>, vector<8x1xf32>
    tpu.vector_store %arg6[%c0_13, %c0_14], %22 {strides = array<i32>} : memref<8x1xf32, #tpu.memory_space<vmem>>, vector<8x1xf32>,
    return
  }
  func.func @transform_0(%arg0: i32) -> (i32, i32) {
    %c0_i32 = arith.constant 0 : i32
    %c0_i32_0 = arith.constant 0 : i32
    return %arg0, %c0_i32 : i32, i32
  }
  func.func @transform_1(%arg0: i32) -> (i32, i32) {
    %c0_i32 = arith.constant 0 : i32
    %c0_i32_0 = arith.constant 0 : i32
    %c0_i32_1 = arith.constant 0 : i32
    return %c0_i32, %c0_i32_0 : i32, i32
  }
  func.func @transform_2(%arg0: i32) -> (i32, i32) {
    %c0_i32 = arith.constant 0 : i32
    %c0_i32_0 = arith.constant 0 : i32
    %c0_i32_1 = arith.constant 0 : i32
    return %c0_i32, %c0_i32_0 : i32, i32
  }
  func.func @transform_3(%arg0: i32) -> (i32, i32) {
    %c0_i32 = arith.constant 0 : i32
    %c0_i32_0 = arith.constant 0 : i32
    %c0_i32_1 = arith.constant 0 : i32
    return %c0_i32, %c0_i32_0 : i32, i32
  }
  func.func @transform_4(%arg0: i32) -> (i32, i32) {
    %c0_i32 = arith.constant 0 : i32
    %c0_i32_0 = arith.constant 0 : i32
    %c0_i32_1 = arith.constant 0 : i32
    return %c0_i32, %c0_i32_0 : i32, i32
  }
  func.func @transform_5(%arg0: i32) -> (i32, i32) {
    %c0_i32 = arith.constant 0 : i32
    %c0_i32_0 = arith.constant 0 : i32
    return %arg0, %c0_i32 : i32, i32
  }
}

module attributes {stable_mosaic.version = 11 : i64} {
  func.func @gated_attn_kernel(%arg0: i32, %arg1: memref<8x32xf32, #tpu.memory_space<vmem>>, %arg2: memref<32x256xf32, #tpu.memory_space<vmem>>, %arg3: memref<1x256xf32, #tpu.memory_space<vmem>>, %arg4: memref<128x128xf32, #tpu.memory_space<vmem>>, %arg5: memref<1x128xf32, #tpu.memory_space<vmem>>, %arg6: memref<8x1xf32, #tpu.memory_space<vmem>>) attributes {dimension_semantics = [#tpu.dimension_semantics<parallel>], iteration_bounds = array<i64: 1>, scalar_prefetch = 0 : i64, scratch_operands = 0 : i64, tpu.core_type = #tpu.core_type<tc>, window_params = [{transform_indices = @transform_0, window_bounds = array<i64: 8, 32>}, {pipeline_mode = #tpu.pipeline_mode<synchronous>, transform_indices = @transform_1, window_bounds = array<i64: 32, 256>}, {pipeline_mode = #tpu.pipeline_mode<synchronous>, transform_indices = @transform_2, window_bounds = array<i64: 1, 256>}, {pipeline_mode = #tpu.pipeline_mode<synchronous>, transform_indices = @transform_3, window_bounds = array<i64: 128, 128>}, {pipeline_mode = #tpu.pipeline_mode<synchronous>, transform_indices = @transform_4, window_bounds = array<i64: 1, 128>}, {transform_indices = @transform_5, window_bounds = array<i64: 8, 1>}]} {
    %c0 = arith.constant 0 : index
    %c0_0 = arith.constant 0 : index
    %0 = vector.load %arg1[%c0, %c0_0] : memref<8x32xf32, #tpu.memory_space<vmem>>, vector<8x32xf32>
    %c0_1 = arith.constant 0 : index
    %c0_2 = arith.constant 0 : index
    %1 = vector.load %arg2[%c0_1, %c0_2] : memref<32x256xf32, #tpu.memory_space<vmem>>, vector<32x256xf32>
    %cst = arith.constant dense<0.000000e+00> : vector<8x256xf32>
    %2 = tpu.matmul %0, %1, %cst {dimension_numbers = #tpu.dot_dimension_numbers<[1], [0], [0], [1], [0, 0, 1, 1], [], []>} : vector<8x32xf32>, vector<32x256xf32>, vector<8x256xf32> -> vector<8x256xf32>
    %c0_3 = arith.constant 0 : index
    %c0_4 = arith.constant 0 : index
    %3 = vector.load %arg3[%c0_3, %c0_4] : memref<1x256xf32, #tpu.memory_space<vmem>>, vector<1x256xf32>
    %4 = vector.broadcast %3 : vector<1x256xf32> to vector<8x256xf32>
    %5 = arith.addf %2, %4 : vector<8x256xf32>
    %6 = vector.extract_strided_slice %5 {offsets = [0, 0], sizes = [8, 128], strides = [1, 1]} : vector<8x256xf32> to vector<8x128xf32>
    %7 = math.tanh %6 : vector<8x128xf32>
    %8 = vector.extract_strided_slice %5 {offsets = [0, 128], sizes = [8, 128], strides = [1, 1]} : vector<8x256xf32> to vector<8x128xf32>
    %cst_5 = arith.constant 5.000000e-01 : f32
    %9 = vector.broadcast %cst_5 : f32 to vector<8x128xf32>
    %10 = arith.mulf %9, %8 : vector<8x128xf32>
    %11 = math.tanh %10 : vector<8x128xf32>
    %cst_6 = arith.constant 1.000000e+00 : f32
    %12 = vector.broadcast %cst_6 : f32 to vector<8x128xf32>
    %13 = arith.addf %11, %12 : vector<8x128xf32>
    %cst_7 = arith.constant 5.000000e-01 : f32
    %14 = vector.broadcast %cst_7 : f32 to vector<8x128xf32>
    %15 = arith.mulf %14, %13 : vector<8x128xf32>
    %16 = arith.mulf %7, %15 : vector<8x128xf32>
    %c0_8 = arith.constant 0 : index
    %c0_9 = arith.constant 0 : index
    %17 = vector.load %arg4[%c0_8, %c0_9] : memref<128x128xf32, #tpu.memory_space<vmem>>, vector<128x128xf32>
    %cst_10 = arith.constant dense<0.000000e+00> : vector<8x128xf32>
    %18 = tpu.matmul %16, %17, %cst_10 {dimension_numbers = #tpu.dot_dimension_numbers<[1], [0], [0], [1], [0, 0, 1, 1], [], []>} : vector<8x128xf32>, vector<128x128xf32>, vector<8x128xf32> -> vector<8x128xf32>
    %c0_11 = arith.constant 0 : index
    %c0_12 = arith.constant 0 : index
    %19 = vector.load %arg5[%c0_11, %c0_12] : memref<1x128xf32, #tpu.memory_space<vmem>>, vector<1x128xf32>
    %20 = vector.broadcast %19 : vector<1x128xf32> to vector<8x128xf32>
    %21 = arith.addf %18, %20 : vector<8x128xf32>
    %22 = vector.extract_strided_slice %21 {offsets = [0, 0], sizes = [8, 1], strides = [1, 1]} : vector<8x128xf32> to vector<8x1xf32>
    %c0_13 = arith.constant 0 : index
    %c0_14 = arith.constant 0 : index
    %23 = vector.load %arg6[%c0_13, %c0_14] : memref<8x1xf32, #tpu.memory_space<vmem>>, vector<8x1xf32>
    tpu.vector_store %arg6[%c0_13, %c0_14], %22 {strides = array<i32>} : memref<8x1xf32, #tpu.memory_space<vmem>>, vector<8x1xf32>,
    return
  }
  func.func @transform_0(%arg0: i32) -> (i32, i32) {
    %c0_i32 = arith.constant 0 : i32
    %c0_i32_0 = arith.constant 0 : i32
    return %arg0, %c0_i32 : i32, i32
  }
  func.func @transform_1(%arg0: i32) -> (i32, i32) {
    %c0_i32 = arith.constant 0 : i32
    %c0_i32_0 = arith.constant 0 : i32
    %c0_i32_1 = arith.constant 0 : i32
    return %c0_i32, %c0_i32_0 : i32, i32
  }
  func.func @transform_2(%arg0: i32) -> (i32, i32) {
    %c0_i32 = arith.constant 0 : i32
    %c0_i32_0 = arith.constant 0 : i32
    %c0_i32_1 = arith.constant 0 : i32
    return %c0_i32, %c0_i32_0 : i32, i32
  }
  func.func @transform_3(%arg0: i32) -> (i32, i32) {
    %c0_i32 = arith.constant 0 : i32
    %c0_i32_0 = arith.constant 0 : i32
    %c0_i32_1 = arith.constant 0 : i32
    return %c0_i32, %c0_i32_0 : i32, i32
  }
  func.func @transform_4(%arg0: i32) -> (i32, i32) {
    %c0_i32 = arith.constant 0 : i32
    %c0_i32_0 = arith.constant 0 : i32
    %c0_i32_1 = arith.constant 0 : i32
    return %c0_i32, %c0_i32_0 : i32, i32
  }
  func.func @transform_5(%arg0: i32) -> (i32, i32) {
    %c0_i32 = arith.constant 0 : i32
    %c0_i32_0 = arith.constant 0 : i32
    return %arg0, %c0_i32 : i32, i32
  }
}

</mosaic_0001>

<llo_original>
// kernel: tpu_custom_call.1
$region0: #{tpu_custom_call.1}
  #allocation0 [shape = 'u32[]', space=smem, size = 0x4, offset = 0x4, fixed_abs, tag = 'smem constant byte address 0x4 - core index']
  #allocation1 [shape = 'u32[144,128]{1,0:T(1,128)}', space=vmem, size = 0x12000, scoped, tag = 'internal scratch']
  %s0 = inlined_call_operand.hbm [shape: f32[8,32], index: 0, kind: input, shape index: {}]
  %s1 = inlined_call_operand.hbm [shape: f32[32,256], index: 1, kind: input, shape index: {}]
  %s2 = inlined_call_operand.vmem [shape: f32[1,256], index: 2, kind: input, shape index: {}]
  %s3 = inlined_call_operand.hbm [shape: f32[128,128], index: 3, kind: input, shape index: {}]
  %s4 = inlined_call_operand.vmem [shape: f32[1,128], index: 4, kind: input, shape index: {}]
  %s5 = inlined_call_operand.vmem [shape: f32[8,1], index: 5, kind: output, shape index: {}]
  %s6 = sld [smem:[#allocation0]]
  $region42: #{tpu_custom_call.1} parent=0
    _
  %s8 = ssub.s32 1, %s6
  %s9 = scalar_select 0, %s8, %s6
  $region1: #{tpu_custom_call.1} parent=0
    #allocation2 [shape = 'u8[4096]{0}', space=vmem, size = 0x1000, scoped, tag = 'input window, operand 0, single buffered']
    #allocation3 [shape = 's32[1]{0}', space=sflag, size = 0x4, scoped, tag = 'scoped memory for tpu_custom_call.1']
    #allocation4 [shape = 'u8[32768]{0}', space=vmem, size = 0x8000, scoped, tag = 'input window, operand 1, single buffered']
    #allocation5 [shape = 's32[1]{0}', space=sflag, size = 0x4, scoped, tag = 'scoped memory for tpu_custom_call.1']
    #allocation6 [shape = 'u8[65536]{0}', space=vmem, size = 0x10000, scoped, tag = 'input window, operand 3, single buffered']
    %10 = vsyncpa [#allocation3], 0
    %11 = vsyncpa [#allocation5], 0
    // Predicated region
    $region2: #{tpu_custom_call.1} parent=1 // pred_check
      _
    $region3: #{tpu_custom_call.1} parent=1 // pred_check_branch
      %13 = sbr.rel (0) target = $region5
    $region4: #{tpu_custom_call.1} parent=1 // pred_region
      %s15 = ssub.s32 128, 128
      %16 = vsyncadd [#allocation3], %s15
      %s18 = sshll.u32 [#allocation2], 4
      %s19 = int_to_ptr.vmem [resolvable:$true] %s18
      %21 = dma.hbm_to_vmem [thread:$0]  %s0, 128, %s19, [#allocation3]
    $region5: #{tpu_custom_call.1} parent=1 // pred_fallthru
      _
    // Predicated region
    $region6: #{tpu_custom_call.1} parent=1 // pred_check
      _
    $region7: #{tpu_custom_call.1} parent=1 // pred_check_branch
      %23 = sbr.rel (0) target = $region9
    $region8: #{tpu_custom_call.1} parent=1 // pred_region
      %s25 = ssub.s32 1024, 1024
      %26 = vsyncadd [#allocation5], %s25
      %s27 = sshll.u32 [#allocation4], 4
      %s28 = int_to_ptr.vmem [resolvable:$true] %s27
      %33 = dma.hbm_to_vmem [thread:$0]  %s1, 1024, %s28, [#allocation5], 256, 256, 16
    $region9: #{tpu_custom_call.1} parent=1 // pred_fallthru
      _
    // Predicated region
    $region10: #{tpu_custom_call.1} parent=1 // pred_check
      _
    $region11: #{tpu_custom_call.1} parent=1 // pred_check_branch
      %35 = sbr.rel (0) target = $region13
    $region12: #{tpu_custom_call.1} parent=1 // pred_region
      _
    $region13: #{tpu_custom_call.1} parent=1 // pred_fallthru
      _
    // Predicated region
    $region14: #{tpu_custom_call.1} parent=1 // pred_check
      _
    $region15: #{tpu_custom_call.1} parent=1 // pred_check_branch
      %37 = sbr.rel (0) target = $region17
    $region16: #{tpu_custom_call.1} parent=1 // pred_region
      %s39 = ssub.s32 2048, 2048
      %40 = vsyncadd [#allocation5], %s39
      %s41 = sshll.u32 [#allocation6], 4
      %s42 = int_to_ptr.vmem [resolvable:$true] %s41
      %47 = dma.hbm_to_vmem [thread:$0]  %s3, 2048, %s42, [#allocation5], 128, 128, 8
    $region17: #{tpu_custom_call.1} parent=1 // pred_fallthru
      _
    // Predicated region
    $region18: #{tpu_custom_call.1} parent=1 // pred_check
      _
    $region19: #{tpu_custom_call.1} parent=1 // pred_check_branch
      %49 = sbr.rel (0) target = $region21
    $region20: #{tpu_custom_call.1} parent=1 // pred_region
      _
    $region21: #{tpu_custom_call.1} parent=1 // pred_fallthru
      _
    // Predicated region
    $region22: #{tpu_custom_call.1} parent=1 // pred_check
      _
    $region23: #{tpu_custom_call.1} parent=1 // pred_check_branch
      %51 = sbr.rel (0) target = $region25
    $region24: #{tpu_custom_call.1} parent=1 // pred_region
      %52 = dma.done [#allocation3], 128
    $region25: #{tpu_custom_call.1} parent=1 // pred_fallthru
      _
    // Predicated region
    $region26: #{tpu_custom_call.1} parent=1 // pred_check
      _
    $region27: #{tpu_custom_call.1} parent=1 // pred_check_branch
      %54 = sbr.rel (0) target = $region29
    $region28: #{tpu_custom_call.1} parent=1 // pred_region
      %55 = dma.done [#allocation5], 1024
    $region29: #{tpu_custom_call.1} parent=1 // pred_fallthru
      _
    // Predicated region
    $region30: #{tpu_custom_call.1} parent=1 // pred_check
      _
    $region31: #{tpu_custom_call.1} parent=1 // pred_check_branch
      %57 = sbr.rel (0) target = $region33
    $region32: #{tpu_custom_call.1} parent=1 // pred_region
      %58 = dma.done [#allocation5], 2048
    $region33: #{tpu_custom_call.1} parent=1 // pred_fallthru
      _
    %v59 = vld [vmem:[#allocation2] sm:$0xff]
    %v60 = vld [vmem:[#allocation4] sm:$0xff]
    %v61 = vld [vmem:[#allocation4 + $0x8] sm:$0xff]
    %v62 = vld [vmem:[#allocation4 + $0x10] sm:$0xff]
    %v63 = vld [vmem:[#allocation4 + $0x18] sm:$0xff]
    %v64 = vld [vmem:[#allocation4 + $0x20] sm:$0xff]
    %v65 = vld [vmem:[#allocation4 + $0x28] sm:$0xff]
    %v66 = vld [vmem:[#allocation4 + $0x30] sm:$0xff]
    %v67 = vld [vmem:[#allocation4 + $0x38] sm:$0xff]
    %v68 = vld [vmem:[%s2] sm:$0x3]
    %v70 = vlaneseq
    %v71 = vshrl.u32 %v70, 7
    %v72 = vsub.s32 0, %v71
    %v73 = vrot.slane %v68, %v72
    %v74 = vlaneseq
    %v75 = vshrl.u32 %v74, 7
    %v76 = vsub.s32 1, %v75
    %v77 = vrot.slane %v68, %v76
    %vm80 = vcmask 261120
    %v82 = vsel %vm80, %v59, 0
    %84 = vmatprep.subr.mxu0 %v61
    %85 = vmatpush1.msra.mxu0 %v60
    %86 = vmatprep.subr.mxu0 %v63
    %87 = vmatpush1.msra.mxu0 %v62
    %88 = vmatprep.subr.mxu0 %v65
    %89 = vmatpush1.msra.mxu0 %v64
    %90 = vmatprep.subr.mxu0 %v67
    %91 = vmatpush1.msra.mxu0 %v66
    %92 = vmatprep.subr.mxu0 0.0
    %93 = vmatpush1.msra.mxu0 0.0
    %94 = vmatprep.subr.mxu0 0.0
    %95 = vmatpush1.msra.mxu0 0.0
    %96 = vmatprep.subr.mxu0 0.0
    %97 = vmatpush1.msra.mxu0 0.0
    %98 = vmatprep.subr.mxu0 0.0
    %99 = vmatpush1.msra.mxu0 0.0
    %100 = vmatprep.subr.mxu0 0.0
    %101 = vmatpush1.msra.mxu0 0.0
    %102 = vmatprep.subr.mxu0 0.0
    %103 = vmatpush1.msra.mxu0 0.0
    %104 = vmatprep.subr.mxu0 0.0
    %105 = vmatpush1.msra.mxu0 0.0
    %106 = vmatprep.subr.mxu0 0.0
    %107 = vmatpush1.msra.mxu0 0.0
    %108 = vmatprep.subr.mxu0 0.0
    %109 = vmatpush1.msra.mxu0 0.0
    %110 = vmatprep.subr.mxu0 0.0
    %111 = vmatpush1.msra.mxu0 0.0
    %112 = vmatprep.subr.mxu0 0.0
    %113 = vmatpush1.msra.mxu0 0.0
    %114 = vmatprep.subr.mxu0 0.0
    %115 = vmatpush1.msra.mxu0 0.0
    %116 = vmatprep.subr.mxu0 0.0
    %117 = vmatpush1.msra.mxu0 0.0
    %118 = vmatprep.subr.mxu0 0.0
    %119 = vmatpush1.msra.mxu0 0.0
    %120 = vmatprep.subr.mxu0 0.0
    %121 = vmatpush1.msra.mxu0 0.0
    %122 = vmatprep.subr.mxu0 0.0
    %123 = vmatpush1.msra.mxu0 0.0
    %124 = vmatprep.subr.mxu0 0.0
    %125 = vmatpush1.msra.mxu0 0.0
    %126 = vmatprep.subr.mxu0 0.0
    %127 = vmatpush1.msra.mxu0 0.0
    %128 = vmatprep.subr.mxu0 0.0
    %129 = vmatpush1.msra.mxu0 0.0
    %130 = vmatprep.subr.mxu0 0.0
    %131 = vmatpush1.msra.mxu0 0.0
    %132 = vmatprep.subr.mxu0 0.0
    %133 = vmatpush1.msra.mxu0 0.0
    %134 = vmatprep.subr.mxu0 0.0
    %135 = vmatpush1.msra.mxu0 0.0
    %136 = vmatprep.subr.mxu0 0.0
    %137 = vmatpush1.msra.mxu0 0.0
    %138 = vmatprep.subr.mxu0 0.0
    %139 = vmatpush1.msra.mxu0 0.0
    %140 = vmatprep.subr.mxu0 0.0
    %141 = vmatpush1.msra.mxu0 0.0
    %142 = vmatprep.subr.mxu0 0.0
    %143 = vmatpush1.msra.mxu0 0.0
    %144 = vmatprep.subr.mxu0 0.0
    %145 = vmatpush1.msra.mxu0 0.0
    %146 = vmatprep.subr.mxu0 0.0
    %147 = vmatpush1.msra.mxu0 0.0
    %148 = vmatprep.mubr.f32.mxu0 0.0
    %149 = vmatmul.mubr.f32.gmra.mrb[0].mxu0 %v82
    %v150 = vpop.f32.mrb[0].mxu0
    %v151 = vadd.f32 %v73, %v150
    %v152 = vpop.f32.mrb[0].mxu0
    %v153 = vadd.f32 %v77, %v152
    %154 = vdwg.mxu0
    %v155 = vtanh.pop %v151
    %v156 = vmul.f32 %v153, 0.5
    %v157 = vtanh.pop %v156
    %v158 = vadd.f32 %v157, 1.0
    %v159 = vmul.f32 %v158, 0.5
    %v160 = vmul.f32 %v155, %v159
    %v161 = vld [vmem:[#allocation6] sm:$0xff]
    %v162 = vld [vmem:[#allocation6 + $0x8] sm:$0xff]
    %v163 = vld [vmem:[#allocation6 + $0x10] sm:$0xff]
    %v164 = vld [vmem:[#allocation6 + $0x18] sm:$0xff]
    %v165 = vld [vmem:[#allocation6 + $0x20] sm:$0xff]
    %v166 = vld [vmem:[#allocation6 + $0x28] sm:$0xff]
    %v167 = vld [vmem:[#allocation6 + $0x30] sm:$0xff]
    %v168 = vld [vmem:[#allocation6 + $0x38] sm:$0xff]
    %v169 = vld [vmem:[#allocation6 + $0x40] sm:$0xff]
    %v170 = vld [vmem:[#allocation6 + $0x48] sm:$0xff]
    %v171 = vld [vmem:[#allocation6 + $0x50] sm:$0xff]
    %v172 = vld [vmem:[#allocation6 + $0x58] sm:$0xff]
    %v173 = vld [vmem:[#allocation6 + $0x60] sm:$0xff]
    %v174 = vld [vmem:[#allocation6 + $0x68] sm:$0xff]
    %v175 = vld [vmem:[#allocation6 + $0x70] sm:$0xff]
    %v176 = vld [vmem:[#allocation6 + $0x78] sm:$0xff]
    %v177 = vld [vmem:[%s4] sm:$0x1]
    %v179 = vlaneseq
    %v180 = vshrl.u32 %v179, 7
    %v181 = vsub.s32 0, %v180
    %v182 = vrot.slane %v177, %v181
    %184 = vmatprep.subr.mxu0 0.0
    %185 = vmatpush1.msra.mxu0 %v161
    %186 = vmatprep.subr.mxu0 0.0
    %187 = vmatpush1.msra.mxu0 %v162
    %188 = vmatprep.subr.mxu0 0.0
    %189 = vmatpush1.msra.mxu0 %v163
    %190 = vmatprep.subr.mxu0 0.0
    %191 = vmatpush1.msra.mxu0 %v164
    %192 = vmatprep.subr.mxu0 0.0
    %193 = vmatpush1.msra.mxu0 %v165
    %194 = vmatprep.subr.mxu0 0.0
    %195 = vmatpush1.msra.mxu0 %v166
    %196 = vmatprep.subr.mxu0 0.0
    %197 = vmatpush1.msra.mxu0 %v167
    %198 = vmatprep.subr.mxu0 0.0
    %199 = vmatpush1.msra.mxu0 %v168
    %200 = vmatprep.subr.mxu0 0.0
    %201 = vmatpush1.msra.mxu0 %v169
    %202 = vmatprep.subr.mxu0 0.0
    %203 = vmatpush1.msra.mxu0 %v170
    %204 = vmatprep.subr.mxu0 0.0
    %205 = vmatpush1.msra.mxu0 %v171
    %206 = vmatprep.subr.mxu0 0.0
    %207 = vmatpush1.msra.mxu0 %v172
    %208 = vmatprep.subr.mxu0 0.0
    %209 = vmatpush1.msra.mxu0 %v173
    %210 = vmatprep.subr.mxu0 0.0
    %211 = vmatpush1.msra.mxu0 %v174
    %212 = vmatprep.subr.mxu0 0.0
    %213 = vmatpush1.msra.mxu0 %v175
    %214 = vmatprep.subr.mxu0 0.0
    %215 = vmatpush1.msra.mxu0 %v176
    %216 = vmatprep.subr.mxu0 0.0
    %217 = vmatpush1.msra.mxu0 0.0
    %218 = vmatprep.subr.mxu0 0.0
    %219 = vmatpush1.msra.mxu0 0.0
    %220 = vmatprep.subr.mxu0 0.0
    %221 = vmatpush1.msra.mxu0 0.0
    %222 = vmatprep.subr.mxu0 0.0
    %223 = vmatpush1.msra.mxu0 0.0
    %224 = vmatprep.subr.mxu0 0.0
    %225 = vmatpush1.msra.mxu0 0.0
    %226 = vmatprep.subr.mxu0 0.0
    %227 = vmatpush1.msra.mxu0 0.0
    %228 = vmatprep.subr.mxu0 0.0
    %229 = vmatpush1.msra.mxu0 0.0
    %230 = vmatprep.subr.mxu0 0.0
    %231 = vmatpush1.msra.mxu0 0.0
    %232 = vmatprep.subr.mxu0 0.0
    %233 = vmatpush1.msra.mxu0 0.0
    %234 = vmatprep.subr.mxu0 0.0
    %235 = vmatpush1.msra.mxu0 0.0
    %236 = vmatprep.subr.mxu0 0.0
    %237 = vmatpush1.msra.mxu0 0.0
    %238 = vmatprep.subr.mxu0 0.0
    %239 = vmatpush1.msra.mxu0 0.0
    %240 = vmatprep.subr.mxu0 0.0
    %241 = vmatpush1.msra.mxu0 0.0
    %242 = vmatprep.subr.mxu0 0.0
    %243 = vmatpush1.msra.mxu0 0.0
    %244 = vmatprep.subr.mxu0 0.0
    %245 = vmatpush1.msra.mxu0 0.0
    %246 = vmatprep.subr.mxu0 0.0
    %247 = vmatpush1.msra.mxu0 0.0
    %248 = vmatprep.mubr.f32.mxu0 0.0
    %249 = vmatmul.mubr.f32.gmra.mrb[0].mxu0 %v160
    %v250 = vpop.f32.mrb[0].mxu0
    %v251 = vadd.f32 %v182, %v250
    %v252 = vpop.f32.mrb[0].mxu0
    %253 = vdwg.mxu0
    %vm254 = vcmask 7168
    %255 = vst.msk [vmem:[%s5] sm:$0xff] %vm254, %v251
    // Predicated region
    $region34: #{tpu_custom_call.1} parent=1 // pred_check
      _
    $region35: #{tpu_custom_call.1} parent=1 // pred_check_branch
      %257 = sbr.rel (0) target = $region37
    $region36: #{tpu_custom_call.1} parent=1 // pred_region
      _
    $region37: #{tpu_custom_call.1} parent=1 // pred_fallthru
      _
    // Predicated region
    $region38: #{tpu_custom_call.1} parent=1 // pred_check
      _
    $region39: #{tpu_custom_call.1} parent=1 // pred_check_branch
      %259 = sbr.rel (0) target = $region41
    $region40: #{tpu_custom_call.1} parent=1 // pred_region
      _
    $region41: #{tpu_custom_call.1} parent=1 // pred_fallthru
      _
    %260 = vsyncpa [#allocation3], 1
    %261 = vsyncpa [#allocation5], 1

// kernel: tpu_custom_call.1
$region0: #{tpu_custom_call.1}
  #allocation0 [shape = 'u32[]', space=smem, size = 0x4, offset = 0x4, fixed_abs, tag = 'smem constant byte address 0x4 - core index']
  #allocation1 [shape = 'u32[144,128]{1,0:T(1,128)}', space=vmem, size = 0x12000, scoped, tag = 'internal scratch']
  %s0 = inlined_call_operand.hbm [shape: f32[8,32], index: 0, kind: input, shape index: {}]
  %s1 = inlined_call_operand.hbm [shape: f32[32,256], index: 1, kind: input, shape index: {}]
  %s2 = inlined_call_operand.vmem [shape: f32[1,256], index: 2, kind: input, shape index: {}]
  %s3 = inlined_call_operand.hbm [shape: f32[128,128], index: 3, kind: input, shape index: {}]
  %s4 = inlined_call_operand.vmem [shape: f32[1,128], index: 4, kind: input, shape index: {}]
  %s5 = inlined_call_operand.vmem [shape: f32[8,1], index: 5, kind: output, shape index: {}]
  %s6 = sld [smem:[#allocation0]]
  $region42: #{tpu_custom_call.1} parent=0
    _
  %s8 = ssub.s32 1, %s6
  %s9 = scalar_select 0, %s8, %s6
  $region1: #{tpu_custom_call.1} parent=0
    #allocation2 [shape = 'u8[4096]{0}', space=vmem, size = 0x1000, scoped, tag = 'input window, operand 0, single buffered']
    #allocation3 [shape = 's32[1]{0}', space=sflag, size = 0x4, scoped, tag = 'scoped memory for tpu_custom_call.1']
    #allocation4 [shape = 'u8[32768]{0}', space=vmem, size = 0x8000, scoped, tag = 'input window, operand 1, single buffered']
    #allocation5 [shape = 's32[1]{0}', space=sflag, size = 0x4, scoped, tag = 'scoped memory for tpu_custom_call.1']
    #allocation6 [shape = 'u8[65536]{0}', space=vmem, size = 0x10000, scoped, tag = 'input window, operand 3, single buffered']
    %10 = vsyncpa [#allocation3], 0
    %11 = vsyncpa [#allocation5], 0
    // Predicated region
    $region2: #{tpu_custom_call.1} parent=1 // pred_check
      _
    $region3: #{tpu_custom_call.1} parent=1 // pred_check_branch
      %13 = sbr.rel (0) target = $region5
    $region4: #{tpu_custom_call.1} parent=1 // pred_region
      %s15 = ssub.s32 128, 128
      %16 = vsyncadd [#allocation3], %s15
      %s18 = sshll.u32 [#allocation2], 4
      %s19 = int_to_ptr.vmem [resolvable:$true] %s18
      %21 = dma.hbm_to_vmem [thread:$0]  %s0, 128, %s19, [#allocation3]
    $region5: #{tpu_custom_call.1} parent=1 // pred_fallthru
      _
    // Predicated region
    $region6: #{tpu_custom_call.1} parent=1 // pred_check
      _
    $region7: #{tpu_custom_call.1} parent=1 // pred_check_branch
      %23 = sbr.rel (0) target = $region9
    $region8: #{tpu_custom_call.1} parent=1 // pred_region
      %s25 = ssub.s32 1024, 1024
      %26 = vsyncadd [#allocation5], %s25
      %s27 = sshll.u32 [#allocation4], 4
      %s28 = int_to_ptr.vmem [resolvable:$true] %s27
      %33 = dma.hbm_to_vmem [thread:$0]  %s1, 1024, %s28, [#allocation5], 256, 256, 16
    $region9: #{tpu_custom_call.1} parent=1 // pred_fallthru
      _
    // Predicated region
    $region10: #{tpu_custom_call.1} parent=1 // pred_check
      _
    $region11: #{tpu_custom_call.1} parent=1 // pred_check_branch
      %35 = sbr.rel (0) target = $region13
    $region12: #{tpu_custom_call.1} parent=1 // pred_region
      _
    $region13: #{tpu_custom_call.1} parent=1 // pred_fallthru
      _
    // Predicated region
    $region14: #{tpu_custom_call.1} parent=1 // pred_check
      _
    $region15: #{tpu_custom_call.1} parent=1 // pred_check_branch
      %37 = sbr.rel (0) target = $region17
    $region16: #{tpu_custom_call.1} parent=1 // pred_region
      %s39 = ssub.s32 2048, 2048
      %40 = vsyncadd [#allocation5], %s39
      %s41 = sshll.u32 [#allocation6], 4
      %s42 = int_to_ptr.vmem [resolvable:$true] %s41
      %47 = dma.hbm_to_vmem [thread:$0]  %s3, 2048, %s42, [#allocation5], 128, 128, 8
    $region17: #{tpu_custom_call.1} parent=1 // pred_fallthru
      _
    // Predicated region
    $region18: #{tpu_custom_call.1} parent=1 // pred_check
      _
    $region19: #{tpu_custom_call.1} parent=1 // pred_check_branch
      %49 = sbr.rel (0) target = $region21
    $region20: #{tpu_custom_call.1} parent=1 // pred_region
      _
    $region21: #{tpu_custom_call.1} parent=1 // pred_fallthru
      _
    // Predicated region
    $region22: #{tpu_custom_call.1} parent=1 // pred_check
      _
    $region23: #{tpu_custom_call.1} parent=1 // pred_check_branch
      %51 = sbr.rel (0) target = $region25
    $region24: #{tpu_custom_call.1} parent=1 // pred_region
      %52 = dma.done [#allocation3], 128
    $region25: #{tpu_custom_call.1} parent=1 // pred_fallthru
      _
    // Predicated region
    $region26: #{tpu_custom_call.1} parent=1 // pred_check
      _
    $region27: #{tpu_custom_call.1} parent=1 // pred_check_branch
      %54 = sbr.rel (0) target = $region29
    $region28: #{tpu_custom_call.1} parent=1 // pred_region
      %55 = dma.done [#allocation5], 1024
    $region29: #{tpu_custom_call.1} parent=1 // pred_fallthru
      _
    // Predicated region
    $region30: #{tpu_custom_call.1} parent=1 // pred_check
      _
    $region31: #{tpu_custom_call.1} parent=1 // pred_check_branch
      %57 = sbr.rel (0) target = $region33
    $region32: #{tpu_custom_call.1} parent=1 // pred_region
      %58 = dma.done [#allocation5], 2048
    $region33: #{tpu_custom_call.1} parent=1 // pred_fallthru
      _
    %v59 = vld [vmem:[#allocation2] sm:$0xff]
    %v60 = vld [vmem:[#allocation4] sm:$0xff]
    %v61 = vld [vmem:[#allocation4 + $0x8] sm:$0xff]
    %v62 = vld [vmem:[#allocation4 + $0x10] sm:$0xff]
    %v63 = vld [vmem:[#allocation4 + $0x18] sm:$0xff]
    %v64 = vld [vmem:[#allocation4 + $0x20] sm:$0xff]
    %v65 = vld [vmem:[#allocation4 + $0x28] sm:$0xff]
    %v66 = vld [vmem:[#allocation4 + $0x30] sm:$0xff]
    %v67 = vld [vmem:[#allocation4 + $0x38] sm:$0xff]
    %v68 = vld [vmem:[%s2] sm:$0x3]
    %v70 = vlaneseq
    %v71 = vshrl.u32 %v70, 7
    %v72 = vsub.s32 0, %v71
    %v73 = vrot.slane %v68, %v72
    %v74 = vlaneseq
    %v75 = vshrl.u32 %v74, 7
    %v76 = vsub.s32 1, %v75
    %v77 = vrot.slane %v68, %v76
    %vm80 = vcmask 261120
    %v82 = vsel %vm80, %v59, 0
    %84 = vmatprep.subr.mxu0 %v61
    %85 = vmatpush1.msra.mxu0 %v60
    %86 = vmatprep.subr.mxu0 %v63
    %87 = vmatpush1.msra.mxu0 %v62
    %88 = vmatprep.subr.mxu0 %v65
    %89 = vmatpush1.msra.mxu0 %v64
    %90 = vmatprep.subr.mxu0 %v67
    %91 = vmatpush1.msra.mxu0 %v66
    %92 = vmatprep.subr.mxu0 0.0
    %93 = vmatpush1.msra.mxu0 0.0
    %94 = vmatprep.subr.mxu0 0.0
    %95 = vmatpush1.msra.mxu0 0.0
    %96 = vmatprep.subr.mxu0 0.0
    %97 = vmatpush1.msra.mxu0 0.0
    %98 = vmatprep.subr.mxu0 0.0
    %99 = vmatpush1.msra.mxu0 0.0
    %100 = vmatprep.subr.mxu0 0.0
    %101 = vmatpush1.msra.mxu0 0.0
    %102 = vmatprep.subr.mxu0 0.0
    %103 = vmatpush1.msra.mxu0 0.0
    %104 = vmatprep.subr.mxu0 0.0
    %105 = vmatpush1.msra.mxu0 0.0
    %106 = vmatprep.subr.mxu0 0.0
    %107 = vmatpush1.msra.mxu0 0.0
    %108 = vmatprep.subr.mxu0 0.0
    %109 = vmatpush1.msra.mxu0 0.0
    %110 = vmatprep.subr.mxu0 0.0
    %111 = vmatpush1.msra.mxu0 0.0
    %112 = vmatprep.subr.mxu0 0.0
    %113 = vmatpush1.msra.mxu0 0.0
    %114 = vmatprep.subr.mxu0 0.0
    %115 = vmatpush1.msra.mxu0 0.0
    %116 = vmatprep.subr.mxu0 0.0
    %117 = vmatpush1.msra.mxu0 0.0
    %118 = vmatprep.subr.mxu0 0.0
    %119 = vmatpush1.msra.mxu0 0.0
    %120 = vmatprep.subr.mxu0 0.0
    %121 = vmatpush1.msra.mxu0 0.0
    %122 = vmatprep.subr.mxu0 0.0
    %123 = vmatpush1.msra.mxu0 0.0
    %124 = vmatprep.subr.mxu0 0.0
    %125 = vmatpush1.msra.mxu0 0.0
    %126 = vmatprep.subr.mxu0 0.0
    %127 = vmatpush1.msra.mxu0 0.0
    %128 = vmatprep.subr.mxu0 0.0
    %129 = vmatpush1.msra.mxu0 0.0
    %130 = vmatprep.subr.mxu0 0.0
    %131 = vmatpush1.msra.mxu0 0.0
    %132 = vmatprep.subr.mxu0 0.0
    %133 = vmatpush1.msra.mxu0 0.0
    %134 = vmatprep.subr.mxu0 0.0
    %135 = vmatpush1.msra.mxu0 0.0
    %136 = vmatprep.subr.mxu0 0.0
    %137 = vmatpush1.msra.mxu0 0.0
    %138 = vmatprep.subr.mxu0 0.0
    %139 = vmatpush1.msra.mxu0 0.0
    %140 = vmatprep.subr.mxu0 0.0
    %141 = vmatpush1.msra.mxu0 0.0
    %142 = vmatprep.subr.mxu0 0.0
    %143 = vmatpush1.msra.mxu0 0.0
    %144 = vmatprep.subr.mxu0 0.0
    %145 = vmatpush1.msra.mxu0 0.0
    %146 = vmatprep.subr.mxu0 0.0
    %147 = vmatpush1.msra.mxu0 0.0
    %148 = vmatprep.mubr.f32.mxu0 0.0
    %149 = vmatmul.mubr.f32.gmra.mrb[0].mxu0 %v82
    %v150 = vpop.f32.mrb[0].mxu0
    %v151 = vadd.f32 %v73, %v150
    %v152 = vpop.f32.mrb[0].mxu0
    %v153 = vadd.f32 %v77, %v152
    %154 = vdwg.mxu0
    %v155 = vtanh.pop %v151
    %v156 = vmul.f32 %v153, 0.5
    %v157 = vtanh.pop %v156
    %v158 = vadd.f32 %v157, 1.0
    %v159 = vmul.f32 %v158, 0.5
    %v160 = vmul.f32 %v155, %v159
    %v161 = vld [vmem:[#allocation6] sm:$0xff]
    %v162 = vld [vmem:[#allocation6 + $0x8] sm:$0xff]
    %v163 = vld [vmem:[#allocation6 + $0x10] sm:$0xff]
    %v164 = vld [vmem:[#allocation6 + $0x18] sm:$0xff]
    %v165 = vld [vmem:[#allocation6 + $0x20] sm:$0xff]
    %v166 = vld [vmem:[#allocation6 + $0x28] sm:$0xff]
    %v167 = vld [vmem:[#allocation6 + $0x30] sm:$0xff]
    %v168 = vld [vmem:[#allocation6 + $0x38] sm:$0xff]
    %v169 = vld [vmem:[#allocation6 + $0x40] sm:$0xff]
    %v170 = vld [vmem:[#allocation6 + $0x48] sm:$0xff]
    %v171 = vld [vmem:[#allocation6 + $0x50] sm:$0xff]
    %v172 = vld [vmem:[#allocation6 + $0x58] sm:$0xff]
    %v173 = vld [vmem:[#allocation6 + $0x60] sm:$0xff]
    %v174 = vld [vmem:[#allocation6 + $0x68] sm:$0xff]
    %v175 = vld [vmem:[#allocation6 + $0x70] sm:$0xff]
    %v176 = vld [vmem:[#allocation6 + $0x78] sm:$0xff]
    %v177 = vld [vmem:[%s4] sm:$0x1]
    %v179 = vlaneseq
    %v180 = vshrl.u32 %v179, 7
    %v181 = vsub.s32 0, %v180
    %v182 = vrot.slane %v177, %v181
    %184 = vmatprep.subr.mxu0 0.0
    %185 = vmatpush1.msra.mxu0 %v161
    %186 = vmatprep.subr.mxu0 0.0
    %187 = vmatpush1.msra.mxu0 %v162
    %188 = vmatprep.subr.mxu0 0.0
    %189 = vmatpush1.msra.mxu0 %v163
    %190 = vmatprep.subr.mxu0 0.0
    %191 = vmatpush1.msra.mxu0 %v164
    %192 = vmatprep.subr.mxu0 0.0
    %193 = vmatpush1.msra.mxu0 %v165
    %194 = vmatprep.subr.mxu0 0.0
    %195 = vmatpush1.msra.mxu0 %v166
    %196 = vmatprep.subr.mxu0 0.0
    %197 = vmatpush1.msra.mxu0 %v167
    %198 = vmatprep.subr.mxu0 0.0
    %199 = vmatpush1.msra.mxu0 %v168
    %200 = vmatprep.subr.mxu0 0.0
    %201 = vmatpush1.msra.mxu0 %v169
    %202 = vmatprep.subr.mxu0 0.0
    %203 = vmatpush1.msra.mxu0 %v170
    %204 = vmatprep.subr.mxu0 0.0
    %205 = vmatpush1.msra.mxu0 %v171
    %206 = vmatprep.subr.mxu0 0.0
    %207 = vmatpush1.msra.mxu0 %v172
    %208 = vmatprep.subr.mxu0 0.0
    %209 = vmatpush1.msra.mxu0 %v173
    %210 = vmatprep.subr.mxu0 0.0
    %211 = vmatpush1.msra.mxu0 %v174
    %212 = vmatprep.subr.mxu0 0.0
    %213 = vmatpush1.msra.mxu0 %v175
    %214 = vmatprep.subr.mxu0 0.0
    %215 = vmatpush1.msra.mxu0 %v176
    %216 = vmatprep.subr.mxu0 0.0
    %217 = vmatpush1.msra.mxu0 0.0
    %218 = vmatprep.subr.mxu0 0.0
    %219 = vmatpush1.msra.mxu0 0.0
    %220 = vmatprep.subr.mxu0 0.0
    %221 = vmatpush1.msra.mxu0 0.0
    %222 = vmatprep.subr.mxu0 0.0
    %223 = vmatpush1.msra.mxu0 0.0
    %224 = vmatprep.subr.mxu0 0.0
    %225 = vmatpush1.msra.mxu0 0.0
    %226 = vmatprep.subr.mxu0 0.0
    %227 = vmatpush1.msra.mxu0 0.0
    %228 = vmatprep.subr.mxu0 0.0
    %229 = vmatpush1.msra.mxu0 0.0
    %230 = vmatprep.subr.mxu0 0.0
    %231 = vmatpush1.msra.mxu0 0.0
    %232 = vmatprep.subr.mxu0 0.0
    %233 = vmatpush1.msra.mxu0 0.0
    %234 = vmatprep.subr.mxu0 0.0
    %235 = vmatpush1.msra.mxu0 0.0
    %236 = vmatprep.subr.mxu0 0.0
    %237 = vmatpush1.msra.mxu0 0.0
    %238 = vmatprep.subr.mxu0 0.0
    %239 = vmatpush1.msra.mxu0 0.0
    %240 = vmatprep.subr.mxu0 0.0
    %241 = vmatpush1.msra.mxu0 0.0
    %242 = vmatprep.subr.mxu0 0.0
    %243 = vmatpush1.msra.mxu0 0.0
    %244 = vmatprep.subr.mxu0 0.0
    %245 = vmatpush1.msra.mxu0 0.0
    %246 = vmatprep.subr.mxu0 0.0
    %247 = vmatpush1.msra.mxu0 0.0
    %248 = vmatprep.mubr.f32.mxu0 0.0
    %249 = vmatmul.mubr.f32.gmra.mrb[0].mxu0 %v160
    %v250 = vpop.f32.mrb[0].mxu0
    %v251 = vadd.f32 %v182, %v250
    %v252 = vpop.f32.mrb[0].mxu0
    %253 = vdwg.mxu0
    %vm254 = vcmask 7168
    %255 = vst.msk [vmem:[%s5] sm:$0xff] %vm254, %v251
    // Predicated region
    $region34: #{tpu_custom_call.1} parent=1 // pred_check
      _
    $region35: #{tpu_custom_call.1} parent=1 // pred_check_branch
      %257 = sbr.rel (0) target = $region37
    $region36: #{tpu_custom_call.1} parent=1 // pred_region
      _
    $region37: #{tpu_custom_call.1} parent=1 // pred_fallthru
      _
    // Predicated region
    $region38: #{tpu_custom_call.1} parent=1 // pred_check
      _
    $region39: #{tpu_custom_call.1} parent=1 // pred_check_branch
      %259 = sbr.rel (0) target = $region41
    $region40: #{tpu_custom_call.1} parent=1 // pred_region
      _
    $region41: #{tpu_custom_call.1} parent=1 // pred_fallthru
      _
    %260 = vsyncpa [#allocation3], 1
    %261 = vsyncpa [#allocation5], 1

</llo_original>
